<compile_context>
chip_gen: v6e
topology: v6e:2x2x1
jax: 0.10.0
libtpu: 0.0.40
codegen_flags: <defaults>
</compile_context>

<pallas_src>
import functools
import math

import jax
import jax.numpy as jnp
from jax.experimental import pallas as pl
from jax.experimental.pallas import tpu as pltpu


def _iou_counts_kernel(x_ref, gt_ref, tp_ref, un_ref, *, th, lanes, lane_tile,
                       needs_mask):
    """Accumulate per-row intersection / union counts.

    x_ref / gt_ref : (BR, TD) input blocks in native dtype.
    tp_ref / un_ref: (BR, 1) int32 accumulators, resident across the lane
                     (reduction) grid axis; written back to HBM once per row block.
    """
    kd = pl.program_id(1)  # reduction axis (innermost)

    @pl.when(kd == 0)
    def _init():
        tp_ref[...] = jnp.zeros_like(tp_ref)
        un_ref[...] = jnp.zeros_like(un_ref)

    # Threshold in native dtype; keep masks boolean (no full-tile f32 temporaries).
    xb = x_ref[...] >= th
    gb = gt_ref[...] >= th

    if needs_mask:
        # Last lane tile is partial: out-of-bounds elements are garbage; mask them
        # off using the logical global lane index.  (Static Python branch — only
        # traced when the lane extent is not a multiple of the tile.)
        lane_idx = jax.lax.broadcasted_iota(jnp.int32, (1, xb.shape[1]), 1)
        valid = (lane_idx + kd * lane_tile) < lanes
        xb = jnp.logical_and(xb, valid)
        gb = jnp.logical_and(gb, valid)

    inter = jnp.logical_and(xb, gb).astype(jnp.float32)
    union = jnp.logical_or(xb, gb).astype(jnp.float32)

    # Per-tile reductions are exact in f32 (tile lane count << 2^24); cross-tile
    # accumulation is exact in int32.  With multi-MiB tiles this per-step
    # epilogue (one XLU lane-reduce + one width-1 VMEM store per accumulator)
    # is noise relative to the streamed HBM traffic.
    tp_ref[...] += jnp.sum(inter, axis=1, keepdims=True).astype(jnp.int32)
    un_ref[...] += jnp.sum(union, axis=1, keepdims=True).astype(jnp.int32)


def _vmem_capacity_bytes():
    try:
        return int(pltpu.get_tpu_info().vmem_capacity_bytes)
    except Exception:
        return 64 << 20  # conservative (v7x per-TC physical VMEM)


def _pick_fold(n, d):
    """Fold part of D into the sublane axis: (N, D) -> (N*s, D/s).

    Prefer folds that (a) keep >= 128 lanes per row (full vreg lanes) and
    (b) give >= 16 rows, so the parallel row axis can split into >= 2 blocks
    (keeps both v7x TensorCores busy even for batch size 1)."""
    for s in (16, 8, 4, 2, 1):
        if d % s == 0 and d // s >= 128 and n * s >= 16:
            return s
    for s in (16, 8, 4, 2, 1):
        if d % s == 0 and d // s >= 128:
            return s
    for s in (8, 4, 2, 1):
        if d % s == 0:
            return s
    return 1


def _pick_row_block(rows, max_rows=512):
    """8-aligned row block that divides `rows`; yields >= 2 blocks when possible."""
    if rows % 8 == 0 and rows >= 16:
        cap = (min(rows // 2, max_rows) // 8) * 8
        for cand in range(cap, 0, -8):
            if rows % cand == 0:
                return cand
    if rows <= max_rows:
        return rows
    cap = (max_rows // 8) * 8
    for cand in range(cap, 0, -8):
        if rows % cand == 0:
            return cand
    return rows


def iou_loss(x, gt, th=0.2):
    """x, gt: NCHW arrays of identical shape. Returns scalar mean IoU.

    Inputs are streamed in their native dtype; callers may pass bf16 maps to
    halve HBM traffic (thresholding then happens at bf16 precision).
    """
    assert x.shape == gt.shape, (
        "mismatched spatial sizes not supported"
    )  # TODO(synk): F.interpolate(mode='nearest') path when GT spatial != x spatial

    n = x.shape[0]
    d = math.prod(x.shape[1:])

    # Fold part of D into the sublane axis so small batches don't waste vreg
    # sublanes and so the row axis always has >= 2 parallel blocks when possible.
    sub = _pick_fold(n, d)
    rows = n * sub
    lanes = d // sub

    # Pure reshapes of contiguous arrays: no extra HBM pass, no dtype cast.
    x2 = jnp.reshape(x, (rows, lanes))
    gt2 = jnp.reshape(gt, (rows, lanes))

    br = _pick_row_block(rows)

    isz_x = jnp.dtype(x.dtype).itemsize
    isz_gt = jnp.dtype(gt.dtype).itemsize
    itemsize = max(isz_x, isz_gt)

    # Generation-aware per-input tile budget: ~VMEM/8 per tile, so 2 inputs x
    # 2 pipeline buffers stay around half of physical VMEM.
    #   v7x (64 MiB VMEM)  -> 8 MiB tiles, ~32 MiB resident
    #   v5e/v6e (128 MiB)  -> 16 MiB tiles, ~64 MiB resident
    vmem_cap = _vmem_capacity_bytes()
    tile_budget = max(2 << 20, min(16 << 20, vmem_cap // 8))
    budget_lanes = max(512, tile_budget // max(1, br * itemsize))

    if lanes <= budget_lanes:
        td = lanes           # single full-extent lane tile (any width allowed)
        k_steps = 1
        needs_mask = False
    else:
        td = (budget_lanes // 128) * 128   # 128-aligned tile within budget
        k_steps = pl.cdiv(lanes, td)
        needs_mask = (lanes % td) != 0     # partial tail tile -> in-kernel mask

    grid = (pl.cdiv(rows, br), k_steps)

    resident_bytes = 2 * br * td * (isz_x + isz_gt) + 2 * 2 * br * 4
    vmem_limit = int(min(max(resident_bytes + (16 << 20), 32 << 20),
                         max(32 << 20, vmem_cap - (8 << 20))))

    cost = pl.CostEstimate(
        flops=6 * rows * lanes,
        transcendentals=0,
        bytes_accessed=rows * lanes * (isz_x + isz_gt) + 2 * rows * 4,
    )

    kernel = functools.partial(_iou_counts_kernel, th=float(th), lanes=lanes,
                               lane_tile=td, needs_mask=needs_mask)

    # TODO(synk): optionally sweep pipeline_mode=pl.Buffered(3) on the input specs
    # when k_steps is 2-4 and VMEM allows (expected 0-5%).
    tp_rows, un_rows = pl.pallas_call(
        kernel,
        out_shape=(
            jax.ShapeDtypeStruct((rows, 1), jnp.int32),
            jax.ShapeDtypeStruct((rows, 1), jnp.int32),
        ),
        grid=grid,
        in_specs=[
            pl.BlockSpec((br, td), lambda i, k: (i, k)),
            pl.BlockSpec((br, td), lambda i, k: (i, k)),
        ],
        out_specs=(
            pl.BlockSpec((br, 1), lambda i, k: (i, 0)),
            pl.BlockSpec((br, 1), lambda i, k: (i, 0)),
        ),
        compiler_params=pltpu.CompilerParams(
            dimension_semantics=("parallel", "arbitrary"),
            vmem_limit_bytes=vmem_limit,
        ),
        cost_estimate=cost,
    )(x2, gt2)

    # Cheap per-sample finalize in XLA: combine the SUB partial rows of each
    # sample, then iou = tp / union (0 where union == 0), then batch mean.
    tp = jnp.sum(tp_rows.reshape(n, sub), axis=1)
    un = jnp.sum(un_rows.reshape(n, sub), axis=1)
    iou = jnp.where(un == 0, jnp.float32(0.0),
                    tp.astype(jnp.float32) / jnp.maximum(un, 1).astype(jnp.float32))
    # NOTE: matches the PyTorch module, which returns mean(iou), not 1 - mean(iou).
    return jnp.mean(iou)


if __name__ == "__main__":
    key = jax.random.PRNGKey(0)
    kx, kg = jax.random.split(key)
    # small shapes consistent with the module: batch=2, channels=4, spatial=16
    x = jax.random.uniform(kx, (2, 4, 16, 16), dtype=jnp.float32)
    gt = jax.random.uniform(kg, (2, 4, 16, 16), dtype=jnp.float32)

    result = iou_loss(x, gt, th=0.2)
    jax.block_until_ready(result)

    # reference check in plain JAX (same semantics as the torch module)
    xb = (x >= 0.2).astype(jnp.float32)
    tb = (gt >= 0.2).astype(jnp.float32)
    tp = jnp.sum(xb * tb, axis=(1, 2, 3))
    un = jnp.sum((xb + tb) != 0, axis=(1, 2, 3)).astype(jnp.float32)
    iou = jnp.where(un == 0, 0.0, tp / un)
    ref = jnp.mean(iou)
    assert jnp.allclose(result, ref, atol=1e-6), (result, ref)

    print("KERNEL_OK")
</pallas_src>

<mosaic_0001>
module attributes {stable_mosaic.version = 11 : i64} {
  func.func @_iou_counts_kernel(%arg0: i32, %arg1: i32, %arg2: memref<8x128xf32, #tpu.memory_space<vmem>>, %arg3: memref<8x128xf32, #tpu.memory_space<vmem>>, %arg4: memref<8x1xi32, #tpu.memory_space<vmem>>, %arg5: memref<8x1xi32, #tpu.memory_space<vmem>>) attributes {dimension_semantics = [#tpu.dimension_semantics<parallel>, #tpu.dimension_semantics<arbitrary>], iteration_bounds = array<i64: 2, 1>, scalar_prefetch = 0 : i64, scratch_operands = 0 : i64, tpu.core_type = #tpu.core_type<tc>, window_params = [{transform_indices = @transform_0, window_bounds = array<i64: 8, 128>}, {transform_indices = @transform_1, window_bounds = array<i64: 8, 128>}, {transform_indices = @transform_2, window_bounds = array<i64: 8, 1>}, {transform_indices = @transform_3, window_bounds = array<i64: 8, 1>}]} {
    %c0_i32 = arith.constant 0 : i32
    %0 = arith.cmpi eq, %arg1, %c0_i32 : i32
    %1 = arith.extui %0 : i1 to i32
    %c0_i32_0 = arith.constant 0 : i32
    %2 = arith.cmpi ne, %1, %c0_i32_0 : i32
    scf.if %2 {
      %c0_i32_15 = arith.constant 0 : i32
      %27 = vector.broadcast %c0_i32_15 : i32 to vector<8x1xi32>
      %c0_16 = arith.constant 0 : index
      %c0_17 = arith.constant 0 : index
      %28 = vector.load %arg4[%c0_16, %c0_17] : memref<8x1xi32, #tpu.memory_space<vmem>>, vector<8x1xi32>
      tpu.vector_store %arg4[%c0_16, %c0_17], %27 {strides = array<i32>} : memref<8x1xi32, #tpu.memory_space<vmem>>, vector<8x1xi32>,
      %c0_i32_18 = arith.constant 0 : i32
      %29 = vector.broadcast %c0_i32_18 : i32 to vector<8x1xi32>
      %c0_19 = arith.constant 0 : index
      %c0_20 = arith.constant 0 : index
      %30 = vector.load %arg5[%c0_19, %c0_20] : memref<8x1xi32, #tpu.memory_space<vmem>>, vector<8x1xi32>
      tpu.vector_store %arg5[%c0_19, %c0_20], %29 {strides = array<i32>} : memref<8x1xi32, #tpu.memory_space<vmem>>, vector<8x1xi32>,
    } else {
    }
    %c0 = arith.constant 0 : index
    %c0_1 = arith.constant 0 : index
    %3 = vector.load %arg2[%c0, %c0_1] : memref<8x128xf32, #tpu.memory_space<vmem>>, vector<8x128xf32>
    %cst = arith.constant 2.000000e-01 : f32
    %4 = vector.broadcast %cst : f32 to vector<8x128xf32>
    %5 = arith.cmpf oge, %3, %4 : vector<8x128xf32>
    %c0_2 = arith.constant 0 : index
    %c0_3 = arith.constant 0 : index
    %6 = vector.load %arg3[%c0_2, %c0_3] : memref<8x128xf32, #tpu.memory_space<vmem>>, vector<8x128xf32>
    %cst_4 = arith.constant 2.000000e-01 : f32
    %7 = vector.broadcast %cst_4 : f32 to vector<8x128xf32>
    %8 = arith.cmpf oge, %6, %7 : vector<8x128xf32>
    %9 = arith.andi %5, %8 : vector<8x128xi1>
    %10 = arith.extui %9 : vector<8x128xi1> to vector<8x128xi32>
    %11 = arith.sitofp %10 : vector<8x128xi32> to vector<8x128xf32>
    %12 = arith.ori %5, %8 : vector<8x128xi1>
    %13 = arith.extui %12 : vector<8x128xi1> to vector<8x128xi32>
    %14 = arith.sitofp %13 : vector<8x128xi32> to vector<8x128xf32>
    %c0_5 = arith.constant 0 : index
    %c0_6 = arith.constant 0 : index
    %15 = vector.load %arg4[%c0_5, %c0_6] : memref<8x1xi32, #tpu.memory_space<vmem>>, vector<8x1xi32>
    %cst_7 = arith.constant dense<0.000000e+00> : vector<8xf32>
    %16 = vector.multi_reduction <add>, %11, %cst_7 [1] : vector<8x128xf32> to vector<8xf32>
    %17 = vector.shape_cast %16 : vector<8xf32> to vector<8x1xf32>
    %18 = arith.fptosi %17 : vector<8x1xf32> to vector<8x1xi32>
    %19 = arith.addi %15, %18 : vector<8x1xi32>
    %c0_8 = arith.constant 0 : index
    %c0_9 = arith.constant 0 : index
    %20 = vector.load %arg4[%c0_8, %c0_9] : memref<8x1xi32, #tpu.memory_space<vmem>>, vector<8x1xi32>
    tpu.vector_store %arg4[%c0_8, %c0_9], %19 {strides = array<i32>} : memref<8x1xi32, #tpu.memory_space<vmem>>, vector<8x1xi32>,
    %c0_10 = arith.constant 0 : index
    %c0_11 = arith.constant 0 : index
    %21 = vector.load %arg5[%c0_10, %c0_11] : memref<8x1xi32, #tpu.memory_space<vmem>>, vector<8x1xi32>
    %cst_12 = arith.constant dense<0.000000e+00> : vector<8xf32>
    %22 = vector.multi_reduction <add>, %14, %cst_12 [1] : vector<8x128xf32> to vector<8xf32>
    %23 = vector.shape_cast %22 : vector<8xf32> to vector<8x1xf32>
    %24 = arith.fptosi %23 : vector<8x1xf32> to vector<8x1xi32>
    %25 = arith.addi %21, %24 : vector<8x1xi32>
    %c0_13 = arith.constant 0 : index
    %c0_14 = arith.constant 0 : index
    %26 = vector.load %arg5[%c0_13, %c0_14] : memref<8x1xi32, #tpu.memory_space<vmem>>, vector<8x1xi32>
    tpu.vector_store %arg5[%c0_13, %c0_14], %25 {strides = array<i32>} : memref<8x1xi32, #tpu.memory_space<vmem>>, vector<8x1xi32>,
    return
  }
  func.func @transform_0(%arg0: i32, %arg1: i32) -> (i32, i32) {
    %c0_i32 = arith.constant 0 : i32
    return %arg0, %arg1 : i32, i32
  }
  func.func @transform_1(%arg0: i32, %arg1: i32) -> (i32, i32) {
    %c0_i32 = arith.constant 0 : i32
    return %arg0, %arg1 : i32, i32
  }
  func.func @transform_2(%arg0: i32, %arg1: i32) -> (i32, i32) {
    %c0_i32 = arith.constant 0 : i32
    %c0_i32_0 = arith.constant 0 : i32
    return %arg0, %c0_i32 : i32, i32
  }
  func.func @transform_3(%arg0: i32, %arg1: i32) -> (i32, i32) {
    %c0_i32 = arith.constant 0 : i32
    %c0_i32_0 = arith.constant 0 : i32
    return %arg0, %c0_i32 : i32, i32
  }
}

</mosaic_0001>

<llo_original>
// kernel: tpu_custom_call.1
$region0: #{tpu_custom_call.1}
  #allocation0 [shape = 'u32[]', space=smem, size = 0x4, offset = 0x4, fixed_abs, tag = 'smem constant byte address 0x4 - core index']
  #allocation1 [shape = 'u32[144,128]{1,0:T(1,128)}', space=vmem, size = 0x12000, scoped, tag = 'internal scratch']
  %s0 = inlined_call_operand.hbm [shape: f32[16,128], index: 0, kind: input, shape index: {}]
  %s1 = inlined_call_operand.hbm [shape: f32[16,128], index: 1, kind: input, shape index: {}]
  %s2 = inlined_call_operand.vmem [shape: s32[16,1], index: 2, kind: output, shape index: {0}]
  %s3 = inlined_call_operand.vmem [shape: s32[16,1], index: 3, kind: output, shape index: {1}]
  %4 = xla_tuple %s2, %s3
  %s5 = sld [smem:[#allocation0]]
  $region61: #{tpu_custom_call.1} parent=0
    _
  %s7 = ssub.s32 1, %s5
  %s8 = scalar_select 0, %s7, %s5
  $region1: #{tpu_custom_call.1} parent=0
    #allocation2 [shape = 'u8[8192]{0}', space=vmem, size = 0x2000, scoped, tag = 'input window, operand 0']
    #allocation3 [shape = 's32[2]{0}', space=sflag, size = 0x8, scoped, tag = 'scoped memory for tpu_custom_call.1']
    #allocation4 [shape = 'u8[8192]{0}', space=vmem, size = 0x2000, scoped, tag = 'input window, operand 1']
    #allocation5 [shape = 's32[2]{0}', space=sflag, size = 0x8, scoped, tag = 'scoped memory for tpu_custom_call.1']
    %9 = vsyncpa [#allocation3], 0
    %s10 = scalar_lea.sflag [#allocation3], 1
    %11 = vsyncpa %s10, 0
    %12 = vsyncpa [#allocation5], 0
    %s13 = scalar_lea.sflag [#allocation5], 1
    %14 = vsyncpa %s13, 0
    loop: start=0, step=1, limit=4
    $region2: #{tpu_custom_call.1} parent=1 // loop_pre_header
      _
    $region3: #{tpu_custom_call.1} parent=1 // loop_header
      %s16 = sphi 0, %s20
      %p17 = scmp.ge.s32.totalorder %s16, 4
      %s23 = sphi 0, %s35
      %s24 = sphi 0, %s31
      %s25 = sphi 0, %s23
      %s26 = sphi 0, %s24
      %s27 = sphi 0, %s25
      %s28 = sphi 0, %s26
      %s40 = sphi 0, %s42
      %s43 = sphi 0, %s40
      %s44 = sphi 0, %s43
      %s60 = sphi 0, %s44
      %s68 = sphi 0, %s70
      %s71 = sphi 0, %s68
      %s72 = sphi 0, %s71
      %s88 = sphi 0, %s72
      %s94 = sphi 0, %s96
      %s97 = sphi 0, %s94
      %s98 = sphi 0, %s97
      %s114 = sphi 0, %s98
      %s120 = sphi 0, %s122
      %s123 = sphi 0, %s120
      %s124 = sphi 0, %s123
      %s140 = sphi 0, %s124
    $region4: #{tpu_custom_call.1} parent=1 // loop_header_branch
      %19 = sbr.rel (%p17) target = $region8
    $region5: #{tpu_custom_call.1} parent=1 // loop_body
      %s21 = ssub.s32 %s16, 1
      %s22 = ssub.s32 %s16, 2
      %s29 = sadd.s32 1, %s24
      %p30 = scmp.ge.s32.totalorder %s29, 1
      %s31 = scalar_select %p30, 0, %s29
      %s32 = sadd.s32 1, %s23
      %s33 = scalar_select %p30, %s32, %s23
      %p34 = scmp.ge.s32.totalorder %s33, 2
      %s35 = scalar_select %p34, 0, %s33
      %s36 = ssub.s32 %s23, %s35
      %s37 = ssub.s32 %s24, %s31
      %s38 = sor.u32 %s36, %s37
      %p39 = scmp.eq.s32.totalorder %s38, 0
      %s41 = sadd.s32 %s40, 1
      %s42 = scalar_select %p39, %s40, %s41
      %p45 = pneg %p39
      %p46 = scmp.eq.s32.totalorder %s16, 1
      %p47 = por %p45, %p46
      %p48 = scmp.ne.s32.totalorder %s40, %s43
      %p49 = scmp.eq.s32.totalorder %s16, 0
      %p50 = por %p48, %p49
      %p51 = scmp.ne.s32.totalorder %s40, %s43
      %p52 = scmp.eq.s32.totalorder %s21, 1
      %p53 = por %p51, %p52
      %p54 = scmp.ne.s32.totalorder %s43, %s44
      %p55 = scmp.eq.s32.totalorder %s21, 0
      %p56 = por %p54, %p55
      %p57 = scmp.ne.s32.totalorder %s43, %s44
      %p58 = scmp.eq.s32.totalorder %s22, 1
      %p59 = por %p57, %p58
      %p61 = scmp.ne.s32.totalorder %s44, %s60
      %p62 = scmp.eq.s32.totalorder %s22, 0
      %p63 = por %p61, %p62
      %s64 = ssub.s32 %s23, %s35
      %s65 = ssub.s32 %s24, %s31
      %s66 = sor.u32 %s64, %s65
      %p67 = scmp.eq.s32.totalorder %s66, 0
      %s69 = sadd.s32 %s68, 1
      %s70 = scalar_select %p67, %s68, %s69
      %p73 = pneg %p67
      %p74 = scmp.eq.s32.totalorder %s16, 1
      %p75 = por %p73, %p74
      %p76 = scmp.ne.s32.totalorder %s68, %s71
      %p77 = scmp.eq.s32.totalorder %s16, 0
      %p78 = por %p76, %p77
      %p79 = scmp.ne.s32.totalorder %s68, %s71
      %p80 = scmp.eq.s32.totalorder %s21, 1
      %p81 = por %p79, %p80
      %p82 = scmp.ne.s32.totalorder %s71, %s72
      %p83 = scmp.eq.s32.totalorder %s21, 0
      %p84 = por %p82, %p83
      %p85 = scmp.ne.s32.totalorder %s71, %s72
      %p86 = scmp.eq.s32.totalorder %s22, 1
      %p87 = por %p85, %p86
      %p89 = scmp.ne.s32.totalorder %s72, %s88
      %p90 = scmp.eq.s32.totalorder %s22, 0
      %p91 = por %p89, %p90
      %s92 = ssub.s32 %s23, %s35
      %p93 = scmp.eq.s32.totalorder %s92, 0
      %s95 = sadd.s32 %s94, 1
      %s96 = scalar_select %p93, %s94, %s95
      %p99 = pneg %p93
      %p100 = scmp.eq.s32.totalorder %s16, 1
      %p101 = por %p99, %p100
      %p102 = scmp.ne.s32.totalorder %s94, %s97
      %p103 = scmp.eq.s32.totalorder %s16, 0
      %p104 = por %p102, %p103
      %p105 = scmp.ne.s32.totalorder %s94, %s97
      %p106 = scmp.eq.s32.totalorder %s21, 1
      %p107 = por %p105, %p106
      %p108 = scmp.ne.s32.totalorder %s97, %s98
      %p109 = scmp.eq.s32.totalorder %s21, 0
      %p110 = por %p108, %p109
      %p111 = scmp.ne.s32.totalorder %s97, %s98
      %p112 = scmp.eq.s32.totalorder %s22, 1
      %p113 = por %p111, %p112
      %p115 = scmp.ne.s32.totalorder %s98, %s114
      %p116 = scmp.eq.s32.totalorder %s22, 0
      %p117 = por %p115, %p116
      %s118 = ssub.s32 %s23, %s35
      %p119 = scmp.eq.s32.totalorder %s118, 0
      %s121 = sadd.s32 %s120, 1
      %s122 = scalar_select %p119, %s120, %s121
      %p125 = pneg %p119
      %p126 = scmp.eq.s32.totalorder %s16, 1
      %p127 = por %p125, %p126
      %p128 = scmp.ne.s32.totalorder %s120, %s123
      %p129 = scmp.eq.s32.totalorder %s16, 0
      %p130 = por %p128, %p129
      %p131 = scmp.ne.s32.totalorder %s120, %s123
      %p132 = scmp.eq.s32.totalorder %s21, 1
      %p133 = por %p131, %p132
      %p134 = scmp.ne.s32.totalorder %s123, %s124
      %p135 = scmp.eq.s32.totalorder %s21, 0
      %p136 = por %p134, %p135
      %p137 = scmp.ne.s32.totalorder %s123, %s124
      %p138 = scmp.eq.s32.totalorder %s22, 1
      %p139 = por %p137, %p138
      %p141 = scmp.ne.s32.totalorder %s124, %s140
      %p142 = scmp.eq.s32.totalorder %s22, 0
      %p143 = por %p141, %p142
      %p144 = scmp.le.s32.totalorder 1, %s16
      %p145 = scmp.lt.s32.totalorder %s16, 3
      %p146 = pnand %p144, %p145
      %p147 = pneg %p146
      // Predicated region
      $region9: #{tpu_custom_call.1} parent=5 // pred_check
        _
      $region10: #{tpu_custom_call.1} parent=5 // pred_check_branch
        %149 = sbr.rel (%p146) target = $region12
      $region11: #{tpu_custom_call.1} parent=5 // pred_region
        %s150 = ssub.s32 %s16, 1
      $region12: #{tpu_custom_call.1} parent=5 // pred_fallthru
        _
      %p151 = scmp.lt.s32.totalorder %s16, 2
      // Predicated region
      $region13: #{tpu_custom_call.1} parent=5 // pred_check
        %p152 = pneg %p151
      $region14: #{tpu_custom_call.1} parent=5 // pred_check_branch
        %154 = sbr.rel (%p152) target = $region16
      $region15: #{tpu_custom_call.1} parent=5 // pred_region
        // Predicated region
        $region17: #{tpu_custom_call.1} parent=15 // pred_check
          %p155 = pneg %p50
        $region18: #{tpu_custom_call.1} parent=15 // pred_check_branch
          %157 = sbr.rel (%p155) target = $region20
        $region19: #{tpu_custom_call.1} parent=15 // pred_region
          %s158 = sand.u32 %s40, 1
          %s159 = scalar_lea.sflag [#allocation3], %s158
          %s160 = sand.u32 %s40, 1
          %s161 = smul.addr %s160, 8
          %s162 = scalar_lea.vmem [#allocation2], %s161
          %s164 = ssub.s32 128, 128
          %165 = vsyncadd %s159, %s164
          %s166 = sadd.s32 %s24, %s23
          %s167 = smul.addr %s166, 128
          %s168 = scalar_lea.hbm %s0, %s167
          %s170 = sshll.u32 %s162, 4
          %s171 = int_to_ptr.vmem [resolvable:$true] %s170
          %173 = dma.hbm_to_vmem [thread:$0]  %s168, 128, %s171, %s159
        $region20: #{tpu_custom_call.1} parent=15 // pred_fallthru
          _
        // Predicated region
        $region21: #{tpu_custom_call.1} parent=15 // pred_check
          %p174 = pneg %p78
        $region22: #{tpu_custom_call.1} parent=15 // pred_check_branch
          %176 = sbr.rel (%p174) target = $region24
        $region23: #{tpu_custom_call.1} parent=15 // pred_region
          %s177 = sand.u32 %s68, 1
          %s178 = scalar_lea.sflag [#allocation5], %s177
          %s179 = sand.u32 %s68, 1
          %s180 = smul.addr %s179, 8
          %s181 = scalar_lea.vmem [#allocation4], %s180
          %s183 = ssub.s32 128, 128
          %184 = vsyncadd %s178, %s183
          %s185 = sadd.s32 %s24, %s23
          %s186 = smul.addr %s185, 128
          %s187 = scalar_lea.hbm %s1, %s186
          %s189 = sshll.u32 %s181, 4
          %s190 = int_to_ptr.vmem [resolvable:$true] %s189
          %192 = dma.hbm_to_vmem [thread:$0]  %s187, 128, %s190, %s178
        $region24: #{tpu_custom_call.1} parent=15 // pred_fallthru
          _
      $region16: #{tpu_custom_call.1} parent=5 // pred_fallthru
        _
      %p193 = scmp.le.s32.totalorder 1, %s16
      %p194 = scmp.lt.s32.totalorder %s16, 3
      %p195 = pnand %p193, %p194
      %p196 = pneg %p195
      // Predicated region
      $region25: #{tpu_custom_call.1} parent=5 // pred_check
        _
      $region26: #{tpu_custom_call.1} parent=5 // pred_check_branch
        %198 = sbr.rel (%p195) target = $region28
      $region27: #{tpu_custom_call.1} parent=5 // pred_region
        %s199 = ssub.s32 %s16, 1
        %s200 = sand.u32 %s43, 1
        %s201 = scalar_lea.sflag [#allocation3], %s200
        %s202 = sand.u32 %s43, 1
        %s203 = smul.addr %s202, 8
        %s204 = scalar_lea.vmem [#allocation2], %s203
        // Predicated region
        $region29: #{tpu_custom_call.1} parent=27 // pred_check
          %p205 = pneg %p56
        $region30: #{tpu_custom_call.1} parent=27 // pred_check_branch
          %207 = sbr.rel (%p205) target = $region32
        $region31: #{tpu_custom_call.1} parent=27 // pred_region
          %208 = dma.done %s201, 128
        $region32: #{tpu_custom_call.1} parent=27 // pred_fallthru
          _
        %s209 = sand.u32 %s71, 1
        %s210 = scalar_lea.sflag [#allocation5], %s209
        %s211 = sand.u32 %s71, 1
        %s212 = smul.addr %s211, 8
        %s213 = scalar_lea.vmem [#allocation4], %s212
        // Predicated region
        $region33: #{tpu_custom_call.1} parent=27 // pred_check
          %p214 = pneg %p84
        $region34: #{tpu_custom_call.1} parent=27 // pred_check_branch
          %216 = sbr.rel (%p214) target = $region36
        $region35: #{tpu_custom_call.1} parent=27 // pred_region
          %217 = dma.done %s210, 128
        $region36: #{tpu_custom_call.1} parent=27 // pred_fallthru
          _
        %s218 = sand.u32 %s43, 1
        %s219 = scalar_lea.sflag [#allocation3], %s218
        %s220 = sand.u32 %s43, 1
        %s221 = smul.addr %s220, 8
        %s222 = scalar_lea.vmem [#allocation2], %s221
        %p223 = pneg %p56
        %p224 = pneg %p53
        %s225 = sand.u32 %s71, 1
        %s226 = scalar_lea.sflag [#allocation5], %s225
        %s227 = sand.u32 %s71, 1
        %s228 = smul.addr %s227, 8
        %s229 = scalar_lea.vmem [#allocation4], %s228
        %p230 = pneg %p84
        %p231 = pneg %p81
        %p232 = pneg %p110
        %p233 = pneg %p107
        %p234 = scmp.lt.s32.totalorder %s25, 1
        %s235 = scalar_select %p234, %s25, 1
        %s236 = smul.addr %s235, 8
        %s237 = scalar_lea.vmem %s2, %s236
        %p238 = pneg %p136
        %p239 = pneg %p133
        %p240 = scmp.lt.s32.totalorder %s25, 1
        %s241 = scalar_select %p240, %s25, 1
        %s242 = smul.addr %s241, 8
        %s243 = scalar_lea.vmem %s3, %s242
        %p244 = scmp.lt.s32.totalorder %s25, 1
        %s245 = scalar_select %p244, %s25, 1
        %s246 = smul.addr %s245, 8
        %s247 = scalar_lea.vmem %s2, %s246
        %p248 = scmp.lt.s32.totalorder %s25, 1
        %s249 = scalar_select %p248, %s25, 1
        %s250 = smul.addr %s249, 8
        %s251 = scalar_lea.vmem %s3, %s250
        %p252 = scmp.eq.s32.totalorder %s26, 0
        // Predicated region
        $region37: #{tpu_custom_call.1} parent=27 // pred_check
          %p253 = pneg %p252
        $region38: #{tpu_custom_call.1} parent=27 // pred_check_branch
          %255 = sbr.rel (%p253) target = $region40
        $region39: #{tpu_custom_call.1} parent=27 // pred_region
          %vm256 = vcmask 7168
          %257 = vst.msk [vmem:[%s247] sm:$0xff] %vm256, 0
          %258 = vst.msk [vmem:[%s251] sm:$0xff] %vm256, 0
        $region40: #{tpu_custom_call.1} parent=27 // pred_fallthru
          _
        %v259 = vld [vmem:[%s204] sm:$0xff]
        %vm260 = vcmp.ge.f32.partialorder %v259, 0.2
        %v261 = vld [vmem:[%s213] sm:$0xff]
        %vm262 = vcmp.ge.f32.partialorder %v261, 0.2
        %vm263 = vmand %vm260, %vm262
        %v264 = vsel %vm263, 1, 0
        %v265 = vcvt.s32.f32 %v264
        %vm266 = vmor %vm260, %vm262
        %v267 = vsel %vm266, 1, 0
        %v268 = vcvt.s32.f32 %v267
        %v269 = vld [vmem:[%s247] sm:$0xff]
        %270 = vadd.xlane.f32.xlu0 %v265
        %v271 = vpop.xlane.xlu0 %270
        %v272 = vcvt.f32.s32.to.zero.pseudo %v271
        %v273 = vadd.s32 %v269, %v272
        %vm274 = vcmask 7168
        %275 = vst.msk [vmem:[%s247] sm:$0xff] %vm274, %v273
        %v276 = vld [vmem:[%s251] sm:$0xff]
        %277 = vadd.xlane.f32.xlu0 %v268
        %v278 = vpop.xlane.xlu0 %277
        %v279 = vcvt.f32.s32.to.zero.pseudo %v278
        %v280 = vadd.s32 %v276, %v279
        %281 = vst.msk [vmem:[%s251] sm:$0xff] %vm274, %v280
        %p282 = scmp.lt.s32.totalorder %s25, 1
        %s283 = scalar_select %p282, %s25, 1
        %s284 = smul.addr %s283, 8
        %s285 = scalar_lea.vmem %s2, %s284
        %p286 = scmp.lt.s32.totalorder %s25, 1
        %s287 = scalar_select %p286, %s25, 1
        %s288 = smul.addr %s287, 8
        %s289 = scalar_lea.vmem %s3, %s288
        // Predicated region
        $region41: #{tpu_custom_call.1} parent=27 // pred_check
          %p290 = pneg %p107
        $region42: #{tpu_custom_call.1} parent=27 // pred_check_branch
          %292 = sbr.rel (%p290) target = $region44
        $region43: #{tpu_custom_call.1} parent=27 // pred_region
          _
        $region44: #{tpu_custom_call.1} parent=27 // pred_fallthru
          _
        // Predicated region
        $region45: #{tpu_custom_call.1} parent=27 // pred_check
          %p293 = pneg %p133
        $region46: #{tpu_custom_call.1} parent=27 // pred_check_branch
          %295 = sbr.rel (%p293) target = $region48
        $region47: #{tpu_custom_call.1} parent=27 // pred_region
          _
        $region48: #{tpu_custom_call.1} parent=27 // pred_fallthru
          _
      $region28: #{tpu_custom_call.1} parent=5 // pred_fallthru
        _
      %p296 = scmp.le.s32.totalorder 2, %s16
      // Predicated region
      $region49: #{tpu_custom_call.1} parent=5 // pred_check
        %p297 = pneg %p296
      $region50: #{tpu_custom_call.1} parent=5 // pred_check_branch
        %299 = sbr.rel (%p297) target = $region52
      $region51: #{tpu_custom_call.1} parent=5 // pred_region
        %s300 = ssub.s32 %s16, 2
        // Predicated region
        $region53: #{tpu_custom_call.1} parent=51 // pred_check
          %p301 = pneg %p113
        $region54: #{tpu_custom_call.1} parent=51 // pred_check_branch
          %303 = sbr.rel (%p301) target = $region56
        $region55: #{tpu_custom_call.1} parent=51 // pred_region
          %p304 = scmp.lt.s32.totalorder %s27, 1
          %s305 = scalar_select %p304, %s27, 1
          %s306 = smul.addr %s305, 8
          %s307 = scalar_lea.vmem %s2, %s306
        $region56: #{tpu_custom_call.1} parent=51 // pred_fallthru
          _
        // Predicated region
        $region57: #{tpu_custom_call.1} parent=51 // pred_check
          %p308 = pneg %p139
        $region58: #{tpu_custom_call.1} parent=51 // pred_check_branch
          %310 = sbr.rel (%p308) target = $region60
        $region59: #{tpu_custom_call.1} parent=51 // pred_region
          %p311 = scmp.lt.s32.totalorder %s27, 1
          %s312 = scalar_select %p311, %s27, 1
          %s313 = smul.addr %s312, 8
          %s314 = scalar_lea.vmem %s3, %s313
        $region60: #{tpu_custom_call.1} parent=51 // pred_fallthru
          _
      $region52: #{tpu_custom_call.1} parent=5 // pred_fallthru
        _
    $region6: #{tpu_custom_call.1} parent=1 // loop_footer
      %s20 = sadd.s32 1, %s16
    $region7: #{tpu_custom_call.1} parent=1 // loop_footer_branch
      %15 = sbr.rel target = $region3
    $region8: #{tpu_custom_call.1} parent=1 // loop_exit
      _
    %315 = vsyncpa [#allocation3], 1
    %s316 = scalar_lea.sflag [#allocation3], 1
    %317 = vsyncpa %s316, 1
    %318 = vsyncpa [#allocation5], 1
    %s319 = scalar_lea.sflag [#allocation5], 1
    %320 = vsyncpa %s319, 1

</llo_original>
